<compile_context>
chip_gen: v5e
topology: v5e:2x2
jax: 0.10.0
libtpu: 0.0.40
codegen_flags: <defaults>
</compile_context>

<pallas_src>
import jax
import jax.numpy as jnp
from jax.experimental import pallas as pl
from jax.experimental.pallas import tpu as pltpu


def _round_up(n, m):
    return ((n + m - 1) // m) * m


def _pad2d(a, rows, cols):
    a = jnp.asarray(a)
    return jnp.pad(a, ((0, rows - a.shape[0]), (0, cols - a.shape[1])))


def net_forward(x, w1, b1, w2, b2, *, tile_b=None):
    """x:(B,784) f32; w1:(784,200); b1:(1,200); w2:(200,10); b2:(1,10) -> (B,10) f32."""
    B, d_in = x.shape
    d_hid = w1.shape[1]
    d_out = w2.shape[1]

    d_hid_p = _round_up(d_hid, 128)   # 200 -> 256 (lane-dense hidden)
    d_out_p = _round_up(d_out, 128)   # 10  -> 128 (lane-dense output)

    if tile_b is None:
        tile_b = min(256, _round_up(B, 8))
    tile_b = _round_up(tile_b, 8)
    b_pad = _round_up(B, tile_b)
    n_tiles = b_pad // tile_b

    # bf16 into the MXU (f32 accumulate); biases stay f32 for the VPU adds.
    # (In production the weight prep below would be done once, not per call.)
    x_p = _pad2d(x, b_pad, d_in).astype(jnp.bfloat16)
    w1_p = _pad2d(w1, d_in, d_hid_p).astype(jnp.bfloat16)
    b1_p = _pad2d(jnp.asarray(b1).reshape(1, -1), 1, d_hid_p).astype(jnp.float32)
    w2_p = _pad2d(w2, d_hid_p, d_out_p).astype(jnp.bfloat16)
    b2_p = _pad2d(jnp.asarray(b2).reshape(1, -1), 1, d_out_p).astype(jnp.float32)

    def kernel(x_ref, w1_ref, b1_ref, w2_ref, b2_ref, o_ref, m_sc, l_sc):
        i = pl.program_id(0)

        @pl.when(i == 0)
        def _init():
            m_sc[...] = jnp.full_like(m_sc, -jnp.inf)
            l_sc[...] = jnp.zeros_like(l_sc)

        # layer1 + relu  (bf16 MXU, f32 accumulate / f32 elementwise)
        h = jnp.dot(x_ref[...], w1_ref[...], preferred_element_type=jnp.float32)
        h = jnp.maximum(h + b1_ref[...], 0.0)

        # layer2 + relu
        y = jnp.dot(h.astype(jnp.bfloat16), w2_ref[...],
                    preferred_element_type=jnp.float32)
        y = jnp.maximum(y + b2_ref[...], 0.0)                      # (tile_b, d_out_p)

        # Stash raw logits into the VMEM-resident, lane-dense output block.
        start = i * tile_b
        o_ref[pl.ds(pl.multiple_of(start, tile_b), tile_b), :] = y

        # Online per-class (column-wise) max / sum-of-exp across batch tiles.
        # Mask padded batch rows so they don't perturb softmax over dim=0.
        row = start + jax.lax.broadcasted_iota(jnp.int32, (tile_b, 1), 0)
        valid = row < B                                            # (tile_b, 1)
        m_prev = m_sc[...]
        m_new = jnp.maximum(
            m_prev,
            jnp.max(jnp.where(valid, y, -jnp.inf), axis=0, keepdims=True))
        p = jnp.where(valid, jnp.exp(y - m_new), 0.0)
        l_sc[...] = l_sc[...] * jnp.exp(m_prev - m_new) + jnp.sum(
            p, axis=0, keepdims=True)
        m_sc[...] = m_new

        # Final normalization over the whole batch (single epilogue on the last tile).
        @pl.when(i == pl.num_programs(0) - 1)
        def _finalize():
            inv_l = pl.reciprocal(l_sc[...], approx=True)
            o_ref[...] = jnp.exp(o_ref[...] - m_sc[...]) * inv_l

    out_padded = pl.pallas_call(
        kernel,
        out_shape=jax.ShapeDtypeStruct((b_pad, d_out_p), jnp.float32),
        grid_spec=pltpu.PrefetchScalarGridSpec(
            num_scalar_prefetch=0,
            grid=(n_tiles,),
            in_specs=[
                pl.BlockSpec((tile_b, d_in), lambda i: (i, 0)),      # x streams
                pl.BlockSpec((d_in, d_hid_p), lambda i: (0, 0)),     # W1 resident
                pl.BlockSpec((1, d_hid_p), lambda i: (0, 0)),        # b1 resident
                pl.BlockSpec((d_hid_p, d_out_p), lambda i: (0, 0)),  # W2 resident
                pl.BlockSpec((1, d_out_p), lambda i: (0, 0)),        # b2 resident
            ],
            # Same block index every step -> output stays VMEM-resident across the
            # whole batch grid and is written back to HBM once at the end.
            out_specs=pl.BlockSpec((b_pad, d_out_p), lambda i: (0, 0)),
            scratch_shapes=[
                pltpu.VMEM((1, d_out_p), jnp.float32),   # running per-class max
                pltpu.VMEM((1, d_out_p), jnp.float32),   # running per-class sum(exp)
            ],
        ),
        compiler_params=pltpu.CompilerParams(
            # Batch axis carries the online-softmax accumulator + resident output,
            # so it must be sequential ("arbitrary"), not "parallel".
            dimension_semantics=("arbitrary",),
        ),
    )(x_p, w1_p, b1_p, w2_p, b2_p)

    return out_padded[:B, :d_out]


if __name__ == "__main__":
    key = jax.random.PRNGKey(0)
    k_x, k_w1, k_b1, k_w2, k_b2, k_x2 = jax.random.split(key, 6)

    D_IN, D_HID, D_OUT = 784, 200, 10

    # Deterministic PyTorch-Linear-style init (uniform in +/- 1/sqrt(fan_in)).
    w1 = jax.random.uniform(k_w1, (D_IN, D_HID), jnp.float32,
                            -1.0 / (D_IN ** 0.5), 1.0 / (D_IN ** 0.5))
    b1 = jax.random.uniform(k_b1, (1, D_HID), jnp.float32,
                            -1.0 / (D_IN ** 0.5), 1.0 / (D_IN ** 0.5))
    w2 = jax.random.uniform(k_w2, (D_HID, D_OUT), jnp.float32,
                            -1.0 / (D_HID ** 0.5), 1.0 / (D_HID ** 0.5))
    b2 = jax.random.uniform(k_b2, (1, D_OUT), jnp.float32,
                            -1.0 / (D_HID ** 0.5), 1.0 / (D_HID ** 0.5))

    def ref_mixed(xv):
        # Same numerics as the kernel: bf16 operands into the MXU, f32 accumulate.
        h = jnp.dot(xv.astype(jnp.bfloat16), w1.astype(jnp.bfloat16),
                    preferred_element_type=jnp.float32) + b1
        h = jnp.maximum(h, 0.0)
        y = jnp.dot(h.astype(jnp.bfloat16), w2.astype(jnp.bfloat16),
                    preferred_element_type=jnp.float32) + b2
        y = jnp.maximum(y, 0.0)
        return jax.nn.softmax(y, axis=0)

    def ref_f32(xv):
        h = jnp.maximum(xv @ w1 + b1, 0.0)
        y = jnp.maximum(h @ w2 + b2, 0.0)
        return jax.nn.softmax(y, axis=0)

    # Case 1: module-sized batch (B=2) -> single grid step.
    B = 2
    x = jax.random.normal(k_x, (B, D_IN), dtype=jnp.float32)
    out = net_forward(x, w1, b1, w2, b2, tile_b=8)
    jax.block_until_ready(out)
    assert out.shape == (B, D_OUT)
    assert jnp.allclose(out, ref_mixed(x), atol=2e-3, rtol=2e-3)
    assert jnp.allclose(out, ref_f32(x), atol=2e-2, rtol=2e-2)   # bf16-weight tolerance

    # Case 2: multi-tile batch to exercise the online softmax(dim=0) across batch tiles.
    B2 = 64
    x2 = jax.random.normal(k_x2, (B2, D_IN), dtype=jnp.float32)
    out2 = net_forward(x2, w1, b1, w2, b2, tile_b=16)            # 4 batch tiles
    jax.block_until_ready(out2)
    assert out2.shape == (B2, D_OUT)
    assert jnp.allclose(out2, ref_mixed(x2), atol=2e-3, rtol=2e-3)
    assert jnp.allclose(out2, ref_f32(x2), atol=2e-2, rtol=2e-2)

    print("KERNEL_OK")
</pallas_src>

<mosaic_0001>
module attributes {stable_mosaic.version = 11 : i64} {
  func.func @kernel(%arg0: i32, %arg1: memref<8x784xbf16, #tpu.memory_space<vmem>>, %arg2: memref<784x256xbf16, #tpu.memory_space<vmem>>, %arg3: memref<1x256xf32, #tpu.memory_space<vmem>>, %arg4: memref<256x128xbf16, #tpu.memory_space<vmem>>, %arg5: memref<1x128xf32, #tpu.memory_space<vmem>>, %arg6: memref<8x128xf32, #tpu.memory_space<vmem>>, %arg7: memref<1x128xf32, #tpu.memory_space<vmem>>, %arg8: memref<1x128xf32, #tpu.memory_space<vmem>>) attributes {dimension_semantics = [#tpu.dimension_semantics<arbitrary>], iteration_bounds = array<i64: 1>, scalar_prefetch = 0 : i64, scratch_operands = 2 : i64, tpu.core_type = #tpu.core_type<tc>, window_params = [{transform_indices = @transform_0, window_bounds = array<i64: 8, 784>}, {pipeline_mode = #tpu.pipeline_mode<synchronous>, transform_indices = @transform_1, window_bounds = array<i64: 784, 256>}, {pipeline_mode = #tpu.pipeline_mode<synchronous>, transform_indices = @transform_2, window_bounds = array<i64: 1, 256>}, {pipeline_mode = #tpu.pipeline_mode<synchronous>, transform_indices = @transform_3, window_bounds = array<i64: 256, 128>}, {pipeline_mode = #tpu.pipeline_mode<synchronous>, transform_indices = @transform_4, window_bounds = array<i64: 1, 128>}, {pipeline_mode = #tpu.pipeline_mode<synchronous>, transform_indices = @transform_5, window_bounds = array<i64: 8, 128>}]} {
    %c0_i32 = arith.constant 0 : i32
    %0 = arith.cmpi eq, %arg0, %c0_i32 : i32
    %1 = arith.extui %0 : i1 to i32
    %c0_i32_0 = arith.constant 0 : i32
    %2 = arith.cmpi ne, %1, %c0_i32_0 : i32
    scf.if %2 {
      %cst_28 = arith.constant 0xFF800000 : f32
      %55 = vector.broadcast %cst_28 : f32 to vector<1x128xf32>
      %c0_29 = arith.constant 0 : index
      %c0_30 = arith.constant 0 : index
      %56 = vector.load %arg7[%c0_29, %c0_30] : memref<1x128xf32, #tpu.memory_space<vmem>>, vector<1x128xf32>
      tpu.vector_store %arg7[%c0_29, %c0_30], %55 {strides = array<i32>} : memref<1x128xf32, #tpu.memory_space<vmem>>, vector<1x128xf32>,
      %cst_31 = arith.constant 0.000000e+00 : f32
      %57 = vector.broadcast %cst_31 : f32 to vector<1x128xf32>
      %c0_32 = arith.constant 0 : index
      %c0_33 = arith.constant 0 : index
      %58 = vector.load %arg8[%c0_32, %c0_33] : memref<1x128xf32, #tpu.memory_space<vmem>>, vector<1x128xf32>
      tpu.vector_store %arg8[%c0_32, %c0_33], %57 {strides = array<i32>} : memref<1x128xf32, #tpu.memory_space<vmem>>, vector<1x128xf32>,
    } else {
    }
    %c0 = arith.constant 0 : index
    %c0_1 = arith.constant 0 : index
    %3 = vector.load %arg1[%c0, %c0_1] : memref<8x784xbf16, #tpu.memory_space<vmem>>, vector<8x784xbf16>
    %c0_2 = arith.constant 0 : index
    %c0_3 = arith.constant 0 : index
    %4 = vector.load %arg2[%c0_2, %c0_3] : memref<784x256xbf16, #tpu.memory_space<vmem>>, vector<784x256xbf16>
    %cst = arith.constant dense<0.000000e+00> : vector<8x256xf32>
    %5 = tpu.matmul %3, %4, %cst {dimension_numbers = #tpu.dot_dimension_numbers<[1], [0], [0], [1], [0, 0, 1, 1], [], []>} : vector<8x784xbf16>, vector<784x256xbf16>, vector<8x256xf32> -> vector<8x256xf32>
    %c0_4 = arith.constant 0 : index
    %c0_5 = arith.constant 0 : index
    %6 = vector.load %arg3[%c0_4, %c0_5] : memref<1x256xf32, #tpu.memory_space<vmem>>, vector<1x256xf32>
    %7 = vector.broadcast %6 : vector<1x256xf32> to vector<8x256xf32>
    %8 = arith.addf %5, %7 : vector<8x256xf32>
    %cst_6 = arith.constant 0.000000e+00 : f32
    %9 = vector.broadcast %cst_6 : f32 to vector<8x256xf32>
    %10 = arith.maximumf %8, %9 : vector<8x256xf32>
    %11 = arith.truncf %10 : vector<8x256xf32> to vector<8x256xbf16>
    %c0_7 = arith.constant 0 : index
    %c0_8 = arith.constant 0 : index
    %12 = vector.load %arg4[%c0_7, %c0_8] : memref<256x128xbf16, #tpu.memory_space<vmem>>, vector<256x128xbf16>
    %cst_9 = arith.constant dense<0.000000e+00> : vector<8x128xf32>
    %13 = tpu.matmul %11, %12, %cst_9 {dimension_numbers = #tpu.dot_dimension_numbers<[1], [0], [0], [1], [0, 0, 1, 1], [], []>} : vector<8x256xbf16>, vector<256x128xbf16>, vector<8x128xf32> -> vector<8x128xf32>
    %c0_10 = arith.constant 0 : index
    %c0_11 = arith.constant 0 : index
    %14 = vector.load %arg5[%c0_10, %c0_11] : memref<1x128xf32, #tpu.memory_space<vmem>>, vector<1x128xf32>
    %15 = vector.broadcast %14 : vector<1x128xf32> to vector<8x128xf32>
    %16 = arith.addf %13, %15 : vector<8x128xf32>
    %cst_12 = arith.constant 0.000000e+00 : f32
    %17 = vector.broadcast %cst_12 : f32 to vector<8x128xf32>
    %18 = arith.maximumf %16, %17 : vector<8x128xf32>
    %c8_i32 = arith.constant 8 : i32
    %19 = arith.muli %arg0, %c8_i32 : i32
    %20 = tpu.assume_multiple %19, 8 : i32
    %21 = arith.index_cast %20 : i32 to index
    %c0_13 = arith.constant 0 : index
    %22 = vector.load %arg6[%21, %c0_13] : memref<8x128xf32, #tpu.memory_space<vmem>>, vector<8x128xf32>
    tpu.vector_store %arg6[%21, %c0_13], %18 {strides = array<i32>} : memref<8x128xf32, #tpu.memory_space<vmem>>, vector<8x128xf32>,
    %23 = tpu.iota {dimensions = array<i32: 0>} : vector<8x1xi32>
    %24 = vector.broadcast %19 : i32 to vector<8x1xi32>
    %25 = arith.addi %24, %23 : vector<8x1xi32>
    %c2_i32 = arith.constant 2 : i32
    %26 = vector.broadcast %c2_i32 : i32 to vector<8x1xi32>
    %27 = arith.cmpi slt, %25, %26 : vector<8x1xi32>
    %c0_14 = arith.constant 0 : index
    %c0_15 = arith.constant 0 : index
    %28 = vector.load %arg7[%c0_14, %c0_15] : memref<1x128xf32, #tpu.memory_space<vmem>>, vector<1x128xf32>
    %cst_16 = arith.constant 0xFF800000 : f32
    %29 = vector.shape_cast %27 : vector<8x1xi1> to vector<8x1xi1>
    %30 = vector.broadcast %29 : vector<8x1xi1> to vector<8x128xi1>
    %31 = vector.broadcast %cst_16 : f32 to vector<8x128xf32>
    %32 = arith.select %30, %18, %31 : vector<8x128xi1>, vector<8x128xf32>
    %cst_17 = arith.constant dense<0xFF800000> : vector<128xf32>
    %33 = vector.multi_reduction <maximumf>, %32, %cst_17 [0] : vector<8x128xf32> to vector<128xf32>
    %34 = vector.shape_cast %33 : vector<128xf32> to vector<1x128xf32>
    %35 = arith.maximumf %28, %34 : vector<1x128xf32>
    %36 = vector.broadcast %35 : vector<1x128xf32> to vector<8x128xf32>
    %37 = arith.subf %18, %36 : vector<8x128xf32>
    %38 = math.exp %37 : vector<8x128xf32>
    %cst_18 = arith.constant 0.000000e+00 : f32
    %39 = vector.shape_cast %27 : vector<8x1xi1> to vector<8x1xi1>
    %40 = vector.broadcast %39 : vector<8x1xi1> to vector<8x128xi1>
    %41 = vector.broadcast %cst_18 : f32 to vector<8x128xf32>
    %42 = arith.select %40, %38, %41 : vector<8x128xi1>, vector<8x128xf32>
    %c0_19 = arith.constant 0 : index
    %c0_20 = arith.constant 0 : index
    %43 = vector.load %arg8[%c0_19, %c0_20] : memref<1x128xf32, #tpu.memory_space<vmem>>, vector<1x128xf32>
    %44 = arith.subf %28, %35 : vector<1x128xf32>
    %45 = math.exp %44 : vector<1x128xf32>
    %46 = arith.mulf %43, %45 : vector<1x128xf32>
    %cst_21 = arith.constant dense<0.000000e+00> : vector<128xf32>
    %47 = vector.multi_reduction <add>, %42, %cst_21 [0] : vector<8x128xf32> to vector<128xf32>
    %48 = vector.shape_cast %47 : vector<128xf32> to vector<1x128xf32>
    %49 = arith.addf %46, %48 : vector<1x128xf32>
    %c0_22 = arith.constant 0 : index
    %c0_23 = arith.constant 0 : index
    %50 = vector.load %arg8[%c0_22, %c0_23] : memref<1x128xf32, #tpu.memory_space<vmem>>, vector<1x128xf32>
    tpu.vector_store %arg8[%c0_22, %c0_23], %49 {strides = array<i32>} : memref<1x128xf32, #tpu.memory_space<vmem>>, vector<1x128xf32>,
    %c0_24 = arith.constant 0 : index
    %c0_25 = arith.constant 0 : index
    %51 = vector.load %arg7[%c0_24, %c0_25] : memref<1x128xf32, #tpu.memory_space<vmem>>, vector<1x128xf32>
    tpu.vector_store %arg7[%c0_24, %c0_25], %35 {strides = array<i32>} : memref<1x128xf32, #tpu.memory_space<vmem>>, vector<1x128xf32>,
    %c0_i32_26 = arith.constant 0 : i32
    %52 = arith.cmpi eq, %arg0, %c0_i32_26 : i32
    %53 = arith.extui %52 : i1 to i32
    %c0_i32_27 = arith.constant 0 : i32
    %54 = arith.cmpi ne, %53, %c0_i32_27 : i32
    scf.if %54 {
      %c0_28 = arith.constant 0 : index
      %c0_29 = arith.constant 0 : index
      %55 = vector.load %arg8[%c0_28, %c0_29] : memref<1x128xf32, #tpu.memory_space<vmem>>, vector<1x128xf32>
      %56 = tpu.reciprocal %55 {approx = true} : vector<1x128xf32> -> vector<1x128xf32>
      %c0_30 = arith.constant 0 : index
      %c0_31 = arith.constant 0 : index
      %57 = vector.load %arg6[%c0_30, %c0_31] : memref<8x128xf32, #tpu.memory_space<vmem>>, vector<8x128xf32>
      %c0_32 = arith.constant 0 : index
      %c0_33 = arith.constant 0 : index
      %58 = vector.load %arg7[%c0_32, %c0_33] : memref<1x128xf32, #tpu.memory_space<vmem>>, vector<1x128xf32>
      %59 = vector.broadcast %58 : vector<1x128xf32> to vector<8x128xf32>
      %60 = arith.subf %57, %59 : vector<8x128xf32>
      %61 = math.exp %60 : vector<8x128xf32>
      %62 = vector.broadcast %56 : vector<1x128xf32> to vector<8x128xf32>
      %63 = arith.mulf %61, %62 : vector<8x128xf32>
      %c0_34 = arith.constant 0 : index
      %c0_35 = arith.constant 0 : index
      %64 = vector.load %arg6[%c0_34, %c0_35] : memref<8x128xf32, #tpu.memory_space<vmem>>, vector<8x128xf32>
      tpu.vector_store %arg6[%c0_34, %c0_35], %63 {strides = array<i32>} : memref<8x128xf32, #tpu.memory_space<vmem>>, vector<8x128xf32>,
    } else {
    }
    return
  }
  func.func @transform_0(%arg0: i32) -> (i32, i32) {
    %c0_i32 = arith.constant 0 : i32
    %c0_i32_0 = arith.constant 0 : i32
    return %arg0, %c0_i32 : i32, i32
  }
  func.func @transform_1(%arg0: i32) -> (i32, i32) {
    %c0_i32 = arith.constant 0 : i32
    %c0_i32_0 = arith.constant 0 : i32
    %c0_i32_1 = arith.constant 0 : i32
    return %c0_i32, %c0_i32_0 : i32, i32
  }
  func.func @transform_2(%arg0: i32) -> (i32, i32) {
    %c0_i32 = arith.constant 0 : i32
    %c0_i32_0 = arith.constant 0 : i32
    %c0_i32_1 = arith.constant 0 : i32
    return %c0_i32, %c0_i32_0 : i32, i32
  }
  func.func @transform_3(%arg0: i32) -> (i32, i32) {
    %c0_i32 = arith.constant 0 : i32
    %c0_i32_0 = arith.constant 0 : i32
    %c0_i32_1 = arith.constant 0 : i32
    return %c0_i32, %c0_i32_0 : i32, i32
  }
  func.func @transform_4(%arg0: i32) -> (i32, i32) {
    %c0_i32 = arith.constant 0 : i32
    %c0_i32_0 = arith.constant 0 : i32
    %c0_i32_1 = arith.constant 0 : i32
    return %c0_i32, %c0_i32_0 : i32, i32
  }
  func.func @transform_5(%arg0: i32) -> (i32, i32) {
    %c0_i32 = arith.constant 0 : i32
    %c0_i32_0 = arith.constant 0 : i32
    %c0_i32_1 = arith.constant 0 : i32
    return %c0_i32, %c0_i32_0 : i32, i32
  }
}

</mosaic_0001>

<llo_original>
// kernel: tpu_custom_call.1
$region0: #{tpu_custom_call.1}
  #allocation0 [shape = 'u32[]', space=smem, size = 0x4, offset = 0x4, fixed_abs, tag = 'smem constant byte address 0x4 - core index']
  #allocation1 [shape = 'u32[72,128]{1,0:T(1,128)}', space=vmem, size = 0x9000, scoped, tag = 'internal scratch']
  #allocation2 [shape = 'f32[1,128]{1,0:T(1,128)}', space=vmem, size = 0x200, scoped, tag = 'scratch operand']
  #allocation3 [shape = 'f32[1,128]{1,0:T(1,128)}', space=vmem, size = 0x200, scoped, tag = 'scratch operand']
  %s0 = inlined_call_operand.hbm [shape: bf16[8,784], index: 0, kind: input, shape index: {}]
  %s1 = inlined_call_operand.hbm [shape: bf16[784,256], index: 1, kind: input, shape index: {}]
  %s2 = inlined_call_operand.hbm [shape: f32[1,256], index: 2, kind: input, shape index: {}]
  %s3 = inlined_call_operand.hbm [shape: bf16[256,128], index: 3, kind: input, shape index: {}]
  %s4 = inlined_call_operand.vmem [shape: f32[1,128], index: 4, kind: input, shape index: {}]
  %s5 = inlined_call_operand.hbm [shape: f32[8,128], index: 5, kind: output, shape index: {}]
  %s6 = sld [smem:[#allocation0]]
  $region54: #{tpu_custom_call.1} parent=0
    _
  %s8 = ssub.s32 1, %s6
  %s9 = scalar_select 0, %s8, %s6
  $region1: #{tpu_custom_call.1} parent=0
    #allocation4 [shape = 'u8[14336]{0}', space=vmem, size = 0x3800, scoped, tag = 'input window, operand 0, single buffered']
    #allocation5 [shape = 's32[1]{0}', space=sflag, size = 0x4, scoped, tag = 'scoped memory for tpu_custom_call.1']
    #allocation6 [shape = 's32[1]{0}', space=sflag, size = 0x4, scoped, tag = 'scoped memory for tpu_custom_call.1']
    #allocation7 [shape = 'u8[401408]{0}', space=vmem, size = 0x62000, scoped, tag = 'input window, operand 1, single buffered']
    #allocation8 [shape = 's32[1]{0}', space=sflag, size = 0x4, scoped, tag = 'scoped memory for tpu_custom_call.1']
    #allocation9 [shape = 'u8[1024]{0}', space=vmem, size = 0x400, scoped, tag = 'input window, operand 2, single buffered']
    #allocation10 [shape = 'u8[65536]{0}', space=vmem, size = 0x10000, scoped, tag = 'input window, operand 3, single buffered']
    #allocation11 [shape = 's32[1]{0}', space=sflag, size = 0x4, scoped, tag = 'scoped memory for tpu_custom_call.1']
    #allocation12 [shape = 'u8[4096]{0}', space=vmem, size = 0x1000, scoped, tag = 'output window, operand 0, single buffered']
    %10 = vsyncpa [#allocation5], 0
    %11 = vsyncpa [#allocation8], 0
    %12 = vsyncpa [#allocation11], 0
    %13 = vsyncpa [#allocation6], 0
    // Predicated region
    $region2: #{tpu_custom_call.1} parent=1 // pred_check
      _
    $region3: #{tpu_custom_call.1} parent=1 // pred_check_branch
      %15 = sbr.rel (0) target = $region5
    $region4: #{tpu_custom_call.1} parent=1 // pred_region
      %17 = vsyncadd [#allocation5], 0
      %s19 = sshll.u32 %s0, 4
      %s20 = int_to_ptr.hbm [resolvable:$true] %s19
      %s21 = sshll.u32 [#allocation4], 4
      %s22 = int_to_ptr.vmem [resolvable:$true] %s21
      %24 = dma.hbm_to_vmem [thread:$0]  %s20, 448, %s22, [#allocation5]
    $region5: #{tpu_custom_call.1} parent=1 // pred_fallthru
      _
    // Predicated region
    $region6: #{tpu_custom_call.1} parent=1 // pred_check
      _
    $region7: #{tpu_custom_call.1} parent=1 // pred_check_branch
      %26 = sbr.rel (0) target = $region9
    $region8: #{tpu_custom_call.1} parent=1 // pred_region
      %28 = vsyncadd [#allocation8], 0
      %s29 = sshll.u32 %s1, 4
      %s30 = int_to_ptr.hbm [resolvable:$true] %s29
      %s31 = sshll.u32 [#allocation7], 4
      %s32 = int_to_ptr.vmem [resolvable:$true] %s31
      %37 = dma.hbm_to_vmem [thread:$0]  %s30, 12544, %s32, [#allocation8], 128, 128, 8
    $region9: #{tpu_custom_call.1} parent=1 // pred_fallthru
      _
    // Predicated region
    $region10: #{tpu_custom_call.1} parent=1 // pred_check
      _
    $region11: #{tpu_custom_call.1} parent=1 // pred_check_branch
      %39 = sbr.rel (0) target = $region13
    $region12: #{tpu_custom_call.1} parent=1 // pred_region
      %41 = vsyncadd [#allocation8], 0
      %s43 = sshll.u32 %s2, 4
      %s44 = int_to_ptr.hbm [resolvable:$true] %s43
      %s45 = sshll.u32 [#allocation9], 4
      %s46 = int_to_ptr.vmem [resolvable:$true] %s45
      %48 = dma.hbm_to_vmem [thread:$0]  %s44, 32, %s46, [#allocation8]
    $region13: #{tpu_custom_call.1} parent=1 // pred_fallthru
      _
    // Predicated region
    $region14: #{tpu_custom_call.1} parent=1 // pred_check
      _
    $region15: #{tpu_custom_call.1} parent=1 // pred_check_branch
      %50 = sbr.rel (0) target = $region17
    $region16: #{tpu_custom_call.1} parent=1 // pred_region
      %52 = vsyncadd [#allocation11], 0
      %s53 = sshll.u32 %s3, 4
      %s54 = int_to_ptr.hbm [resolvable:$true] %s53
      %s55 = sshll.u32 [#allocation10], 4
      %s56 = int_to_ptr.vmem [resolvable:$true] %s55
      %61 = dma.hbm_to_vmem [thread:$0]  %s54, 2048, %s56, [#allocation11], 64, 64, 4
    $region17: #{tpu_custom_call.1} parent=1 // pred_fallthru
      _
    // Predicated region
    $region18: #{tpu_custom_call.1} parent=1 // pred_check
      _
    $region19: #{tpu_custom_call.1} parent=1 // pred_check_branch
      %63 = sbr.rel (0) target = $region21
    $region20: #{tpu_custom_call.1} parent=1 // pred_region
      _
    $region21: #{tpu_custom_call.1} parent=1 // pred_fallthru
      _
    // Predicated region
    $region22: #{tpu_custom_call.1} parent=1 // pred_check
      _
    $region23: #{tpu_custom_call.1} parent=1 // pred_check_branch
      %65 = sbr.rel (0) target = $region25
    $region24: #{tpu_custom_call.1} parent=1 // pred_region
      %67 = dma.done [#allocation5], 448
    $region25: #{tpu_custom_call.1} parent=1 // pred_fallthru
      _
    // Predicated region
    $region26: #{tpu_custom_call.1} parent=1 // pred_check
      _
    $region27: #{tpu_custom_call.1} parent=1 // pred_check_branch
      %69 = sbr.rel (0) target = $region29
    $region28: #{tpu_custom_call.1} parent=1 // pred_region
      %71 = dma.done [#allocation8], 12544
    $region29: #{tpu_custom_call.1} parent=1 // pred_fallthru
      _
    // Predicated region
    $region30: #{tpu_custom_call.1} parent=1 // pred_check
      _
    $region31: #{tpu_custom_call.1} parent=1 // pred_check_branch
      %73 = sbr.rel (0) target = $region33
    $region32: #{tpu_custom_call.1} parent=1 // pred_region
      %75 = dma.done [#allocation8], 32
    $region33: #{tpu_custom_call.1} parent=1 // pred_fallthru
      _
    // Predicated region
    $region34: #{tpu_custom_call.1} parent=1 // pred_check
      _
    $region35: #{tpu_custom_call.1} parent=1 // pred_check_branch
      %77 = sbr.rel (0) target = $region37
    $region36: #{tpu_custom_call.1} parent=1 // pred_region
      %79 = dma.done [#allocation11], 2048
    $region37: #{tpu_custom_call.1} parent=1 // pred_fallthru
      _
    %p81 = scmp.eq.s32.totalorder 0, 0
    // Predicated region
    $region38: #{tpu_custom_call.1} parent=1 // pred_check
      %p82 = pneg %p81
    $region39: #{tpu_custom_call.1} parent=1 // pred_check_branch
      %84 = sbr.rel (%p82) target = $region41
    $region40: #{tpu_custom_call.1} parent=1 // pred_region
      %85 = vst [vmem:[#allocation2] sm:$0x1] -inf
      %86 = vst [vmem:[#allocation3] sm:$0x1] 0.0
    $region41: #{tpu_custom_call.1} parent=1 // pred_fallthru
      _
    %v87 = vld [vmem:[#allocation4] sm:$0xff]
    %v88 = vld [vmem:[#allocation4 + $0x8] sm:$0xff]
    %v89 = vld [vmem:[#allocation4 + $0x10] sm:$0xff]
    %v90 = vld [vmem:[#allocation4 + $0x18] sm:$0xf]
    %v91 = vld [vmem:[#allocation7] sm:$0xff]
    %v92 = vld [vmem:[#allocation7 + $0x8] sm:$0xff]
    %v93 = vld [vmem:[#allocation7 + $0x10] sm:$0xff]
    %v94 = vld [vmem:[#allocation7 + $0x18] sm:$0xff]
    %v95 = vld [vmem:[#allocation7 + $0x20] sm:$0xff]
    %v96 = vld [vmem:[#allocation7 + $0x28] sm:$0xff]
    %v97 = vld [vmem:[#allocation7 + $0x30] sm:$0xff]
    %v98 = vld [vmem:[#allocation7 + $0x38] sm:$0xff]
    %v99 = vld [vmem:[#allocation7 + $0x40] sm:$0xff]
    %v100 = vld [vmem:[#allocation7 + $0x48] sm:$0xff]
    %v101 = vld [vmem:[#allocation7 + $0x50] sm:$0xff]
    %v102 = vld [vmem:[#allocation7 + $0x58] sm:$0xff]
    %v103 = vld [vmem:[#allocation7 + $0x60] sm:$0xff]
    %v104 = vld [vmem:[#allocation7 + $0x68] sm:$0xff]
    %v105 = vld [vmem:[#allocation7 + $0x70] sm:$0xff]
    %v106 = vld [vmem:[#allocation7 + $0x78] sm:$0xff]
    %v107 = vld [vmem:[#allocation7 + $0x80] sm:$0xff]
    %v108 = vld [vmem:[#allocation7 + $0x88] sm:$0xff]
    %v109 = vld [vmem:[#allocation7 + $0x90] sm:$0xff]
    %v110 = vld [vmem:[#allocation7 + $0x98] sm:$0xff]
    %v111 = vld [vmem:[#allocation7 + $0xa0] sm:$0xff]
    %v112 = vld [vmem:[#allocation7 + $0xa8] sm:$0xff]
    %v113 = vld [vmem:[#allocation7 + $0xb0] sm:$0xff]
    %v114 = vld [vmem:[#allocation7 + $0xb8] sm:$0xff]
    %v115 = vld [vmem:[#allocation7 + $0xc0] sm:$0xff]
    %v116 = vld [vmem:[#allocation7 + $0xc8] sm:$0xff]
    %v117 = vld [vmem:[#allocation7 + $0xd0] sm:$0xff]
    %v118 = vld [vmem:[#allocation7 + $0xd8] sm:$0xff]
    %v119 = vld [vmem:[#allocation7 + $0xe0] sm:$0xff]
    %v120 = vld [vmem:[#allocation7 + $0xe8] sm:$0xff]
    %v121 = vld [vmem:[#allocation7 + $0xf0] sm:$0xff]
    %v122 = vld [vmem:[#allocation7 + $0xf8] sm:$0xff]
    %v123 = vld [vmem:[#allocation7 + $0x100] sm:$0xff]
    %v124 = vld [vmem:[#allocation7 + $0x108] sm:$0xff]
    %v125 = vld [vmem:[#allocation7 + $0x110] sm:$0xff]
    %v126 = vld [vmem:[#allocation7 + $0x118] sm:$0xff]
    %v127 = vld [vmem:[#allocation7 + $0x120] sm:$0xff]
    %v128 = vld [vmem:[#allocation7 + $0x128] sm:$0xff]
    %v129 = vld [vmem:[#allocation7 + $0x130] sm:$0xff]
    %v130 = vld [vmem:[#allocation7 + $0x138] sm:$0xff]
    %v131 = vld [vmem:[#allocation7 + $0x140] sm:$0xff]
    %v132 = vld [vmem:[#allocation7 + $0x148] sm:$0xff]
    %v133 = vld [vmem:[#allocation7 + $0x150] sm:$0xff]
    %v134 = vld [vmem:[#allocation7 + $0x158] sm:$0xff]
    %v135 = vld [vmem:[#allocation7 + $0x160] sm:$0xff]
    %v136 = vld [vmem:[#allocation7 + $0x168] sm:$0xff]
    %v137 = vld [vmem:[#allocation7 + $0x170] sm:$0xff]
    %v138 = vld [vmem:[#allocation7 + $0x178] sm:$0xff]
    %v139 = vld [vmem:[#allocation7 + $0x180] sm:$0xff]
    %v140 = vld [vmem:[#allocation7 + $0x188] sm:$0xff]
    %v141 = vld [vmem:[#allocation7 + $0x190] sm:$0xff]
    %v142 = vld [vmem:[#allocation7 + $0x198] sm:$0xff]
    %v143 = vld [vmem:[#allocation7 + $0x1a0] sm:$0xff]
    %v144 = vld [vmem:[#allocation7 + $0x1a8] sm:$0xff]
    %v145 = vld [vmem:[#allocation7 + $0x1b0] sm:$0xff]
    %v146 = vld [vmem:[#allocation7 + $0x1b8] sm:$0xff]
    %v147 = vld [vmem:[#allocation7 + $0x1c0] sm:$0xff]
    %v148 = vld [vmem:[#allocation7 + $0x1c8] sm:$0xff]
    %v149 = vld [vmem:[#allocation7 + $0x1d0] sm:$0xff]
    %v150 = vld [vmem:[#allocation7 + $0x1d8] sm:$0xff]
    %v151 = vld [vmem:[#allocation7 + $0x1e0] sm:$0xff]
    %v152 = vld [vmem:[#allocation7 + $0x1e8] sm:$0xff]
    %v153 = vld [vmem:[#allocation7 + $0x1f0] sm:$0xff]
    %v154 = vld [vmem:[#allocation7 + $0x1f8] sm:$0xff]
    %v155 = vld [vmem:[#allocation7 + $0x200] sm:$0xff]
    %v156 = vld [vmem:[#allocation7 + $0x208] sm:$0xff]
    %v157 = vld [vmem:[#allocation7 + $0x210] sm:$0xff]
    %v158 = vld [vmem:[#allocation7 + $0x218] sm:$0xff]
    %v159 = vld [vmem:[#allocation7 + $0x220] sm:$0xff]
    %v160 = vld [vmem:[#allocation7 + $0x228] sm:$0xff]
    %v161 = vld [vmem:[#allocation7 + $0x230] sm:$0xff]
    %v162 = vld [vmem:[#allocation7 + $0x238] sm:$0xff]
    %v163 = vld [vmem:[#allocation7 + $0x240] sm:$0xff]
    %v164 = vld [vmem:[#allocation7 + $0x248] sm:$0xff]
    %v165 = vld [vmem:[#allocation7 + $0x250] sm:$0xff]
    %v166 = vld [vmem:[#allocation7 + $0x258] sm:$0xff]
    %v167 = vld [vmem:[#allocation7 + $0x260] sm:$0xff]
    %v168 = vld [vmem:[#allocation7 + $0x268] sm:$0xff]
    %v169 = vld [vmem:[#allocation7 + $0x270] sm:$0xff]
    %v170 = vld [vmem:[#allocation7 + $0x278] sm:$0xff]
    %v171 = vld [vmem:[#allocation7 + $0x280] sm:$0xff]
    %v172 = vld [vmem:[#allocation7 + $0x288] sm:$0xff]
    %v173 = vld [vmem:[#allocation7 + $0x290] sm:$0xff]
    %v174 = vld [vmem:[#allocation7 + $0x298] sm:$0xff]
    %v175 = vld [vmem:[#allocation7 + $0x2a0] sm:$0xff]
    %v176 = vld [vmem:[#allocation7 + $0x2a8] sm:$0xff]
    %v177 = vld [vmem:[#allocation7 + $0x2b0] sm:$0xff]
    %v178 = vld [vmem:[#allocation7 + $0x2b8] sm:$0xff]
    %v179 = vld [vmem:[#allocation7 + $0x2c0] sm:$0xff]
    %v180 = vld [vmem:[#allocation7 + $0x2c8] sm:$0xff]
    %v181 = vld [vmem:[#allocation7 + $0x2d0] sm:$0xff]
    %v182 = vld [vmem:[#allocation7 + $0x2d8] sm:$0xff]
    %v183 = vld [vmem:[#allocation7 + $0x2e0] sm:$0xff]
    %v184 = vld [vmem:[#allocation7 + $0x2e8] sm:$0xff]
    %v185 = vld [vmem:[#allocation7 + $0x2f0] sm:$0xff]
    %v186 = vld [vmem:[#allocation7 + $0x2f8] sm:$0xff]
    %v187 = vld [vmem:[#allocation7 + $0x300] sm:$0xff]
    %v188 = vld [vmem:[#allocation7 + $0x308] sm:$0xff]
    %v189 = vld [vmem:[#allocation9] sm:$0x3]
    %v191 = vperm.slane %v189, 0
    %v192 = vperm.slane %v189, 1
    %v199 = vunpack.c.l.b16 %v87
    %v200 = vunpack.c.h.b16 %v87
    %v201 = vunpack.c.l.b16 %v88
    %v202 = vunpack.c.h.b16 %v88
    %v203 = vunpack.c.l.b16 %v89
    %v204 = vunpack.c.h.b16 %v89
    %v205 = vunpack.c.l.b16 %v90
    %v206 = vpack.c.b16 %v199, %v199
    %v207 = vpack.c.b16 %v200, %v200
    %v208 = vpack.c.b16 %v201, %v201
    %v209 = vpack.c.b16 %v202, %v202
    %v210 = vpack.c.b16 %v203, %v203
    %v211 = vpack.c.b16 %v204, %v204
    %v212 = vpack.c.b16 %v205, %v205
    %v317 = vunpack.c.l.b16 %v91
    %v318 = vunpack.c.h.b16 %v91
    %v319 = vunpack.c.l.b16 %v92
    %v320 = vunpack.c.h.b16 %v92
    %v321 = vunpack.c.l.b16 %v93
    %v322 = vunpack.c.h.b16 %v93
    %v323 = vunpack.c.l.b16 %v94
    %v324 = vunpack.c.h.b16 %v94
    %v325 = vunpack.c.l.b16 %v95
    %v326 = vunpack.c.h.b16 %v95
    %v327 = vunpack.c.l.b16 %v96
    %v328 = vunpack.c.h.b16 %v96
    %v329 = vunpack.c.l.b16 %v97
    %v330 = vunpack.c.h.b16 %v97
    %v331 = vunpack.c.l.b16 %v98
    %v332 = vunpack.c.h.b16 %v98
    %v333 = vunpack.c.l.b16 %v99
    %v334 = vunpack.c.h.b16 %v99
    %v335 = vunpack.c.l.b16 %v100
    %v336 = vunpack.c.h.b16 %v100
    %v337 = vunpack.c.l.b16 %v101
    %v338 = vunpack.c.h.b16 %v101
    %v339 = vunpack.c.l.b16 %v102
    %v340 = vunpack.c.h.b16 %v102
    %v341 = vunpack.c.l.b16 %v103
    %v342 = vunpack.c.h.b16 %v103
    %v343 = vunpack.c.l.b16 %v104
    %v344 = vunpack.c.h.b16 %v104
    %v345 = vunpack.c.l.b16 %v105
    %v346 = vunpack.c.h.b16 %v105
    %v347 = vunpack.c.l.b16 %v106
    %v348 = vunpack.c.h.b16 %v106
    %v349 = vunpack.c.l.b16 %v107
    %v350 = vunpack.c.h.b16 %v107
    %v351 = vunpack.c.l.b16 %v108
    %v352 = vunpack.c.h.b16 %v108
    %v353 = vunpack.c.l.b16 %v109
    %v354 = vunpack.c.h.b16 %v109
    %v355 = vunpack.c.l.b16 %v110
    %v356 = vunpack.c.h.b16 %v110
    %v357 = vunpack.c.l.b16 %v111
    %v358 = vunpack.c.h.b16 %v111
    %v359 = vunpack.c.l.b16 %v112
    %v360 = vunpack.c.h.b16 %v112
    %v361 = vunpack.c.l.b16 %v113
    %v362 = vunpack.c.h.b16 %v113
    %v363 = vunpack.c.l.b16 %v114
    %v364 = vunpack.c.h.b16 %v114
    %v365 = vunpack.c.l.b16 %v115
    %v366 = vunpack.c.h.b16 %v115
    %v367 = vunpack.c.l.b16 %v116
    %v368 = vunpack.c.h.b16 %v116
    %v369 = vunpack.c.l.b16 %v117
    %v370 = vunpack.c.h.b16 %v117
    %v371 = vunpack.c.l.b16 %v118
    %v372 = vunpack.c.h.b16 %v118
    %v373 = vunpack.c.l.b16 %v119
    %v374 = vunpack.c.h.b16 %v119
    %v375 = vunpack.c.l.b16 %v120
    %v376 = vunpack.c.h.b16 %v120
    %v377 = vunpack.c.l.b16 %v121
    %v378 = vunpack.c.h.b16 %v121
    %v379 = vunpack.c.l.b16 %v122
    %v380 = vunpack.c.h.b16 %v122
    %v381 = vunpack.c.l.b16 %v123
    %v382 = vunpack.c.h.b16 %v123
    %v383 = vunpack.c.l.b16 %v124
    %v384 = vunpack.c.h.b16 %v124
    %v385 = vunpack.c.l.b16 %v125
    %v386 = vunpack.c.h.b16 %v125
    %v387 = vunpack.c.l.b16 %v126
    %v388 = vunpack.c.h.b16 %v126
    %v389 = vunpack.c.l.b16 %v127
    %v390 = vunpack.c.h.b16 %v127
    %v391 = vunpack.c.l.b16 %v128
    %v392 = vunpack.c.h.b16 %v128
    %v393 = vunpack.c.l.b16 %v129
    %v394 = vunpack.c.h.b16 %v129
    %v395 = vunpack.c.l.b16 %v130
    %v396 = vunpack.c.h.b16 %v130
    %v397 = vunpack.c.l.b16 %v131
    %v398 = vunpack.c.h.b16 %v131
    %v399 = vunpack.c.l.b16 %v132
    %v400 = vunpack.c.h.b16 %v132
    %v401 = vunpack.c.l.b16 %v133
    %v402 = vunpack.c.h.b16 %v133
    %v403 = vunpack.c.l.b16 %v134
    %v404 = vunpack.c.h.b16 %v134
    %v405 = vunpack.c.l.b16 %v135
    %v406 = vunpack.c.h.b16 %v135
    %v407 = vunpack.c.l.b16 %v136
    %v408 = vunpack.c.h.b16 %v136
    %v409 = vunpack.c.l.b16 %v137
    %v410 = vunpack.c.h.b16 %v137
    %v411 = vunpack.c.l.b16 %v138
    %v412 = vunpack.c.h.b16 %v138
    %v413 = vunpack.c.l.b16 %v139
    %v414 = vunpack.c.h.b16 %v139
    %v415 = vunpack.c.l.b16 %v140
    %v416 = vunpack.c.h.b16 %v140
    %v417 = vunpack.c.l.b16 %v141
    %v418 = vunpack.c.h.b16 %v141
    %v419 = vunpack.c.l.b16 %v142
    %v420 = vunpack.c.h.b16 %v142
    %v421 = vunpack.c.l.b16 %v143
    %v422 = vunpack.c.h.b16 %v143
    %v423 = vunpack.c.l.b16 %v144
    %v424 = vunpack.c.h.b16 %v144
    %v425 = vunpack.c.l.b16 %v145
    %v426 = vunpack.c.h.b16 %v145
    %v427 = vunpack.c.l.b16 %v146
    %v428 = vunpack.c.h.b16 %v146
    %v429 = vunpack.c.l.b16 %v147
    %v430 = vunpack.c.h.b16 %v147
    %v431 = vunpack.c.l.b16 %v148
    %v432 = vunpack.c.h.b16 %v148
    %v433 = vunpack.c.l.b16 %v149
    %v434 = vunpack.c.h.b16 %v149
    %v435 = vunpack.c.l.b16 %v150
    %v436 = vunpack.c.h.b16 %v150
    %v437 = vunpack.c.l.b16 %v151
    %v438 = vunpack.c.h.b16 %v151
    %v439 = vunpack.c.l.b16 %v152
    %v440 = vunpack.c.h.b16 %v152
    %v441 = vunpack.c.l.b16 %v153
    %v442 = vunpack.c.h.b16 %v153
    %v443 = vunpack.c.l.b16 %v154
    %v444 = vunpack.c.h.b16 %v154
    %v445 = vunpack.c.l.b16 %v155
    %v446 = vunpack.c.h.b16 %v155
    %v447 = vunpack.c.l.b16 %v156
    %v448 = vunpack.c.h.b16 %v156
    %v449 = vunpack.c.l.b16 %v157
    %v450 = vunpack.c.h.b16 %v157
    %v451 = vunpack.c.l.b16 %v158
    %v452 = vunpack.c.h.b16 %v158
    %v453 = vunpack.c.l.b16 %v159
    %v454 = vunpack.c.h.b16 %v159
    %v455 = vunpack.c.l.b16 %v160
    %v456 = vunpack.c.h.b16 %v160
    %v457 = vunpack.c.l.b16 %v161
    %v458 = vunpack.c.h.b16 %v161
    %v459 = vunpack.c.l.b16 %v162
    %v460 = vunpack.c.h.b16 %v162
    %v461 = vunpack.c.l.b16 %v163
    %v462 = vunpack.c.h.b16 %v163
    %v463 = vunpack.c.l.b16 %v164
    %v464 = vunpack.c.h.b16 %v164
    %v465 = vunpack.c.l.b16 %v165
    %v466 = vunpack.c.h.b16 %v165
    %v467 = vunpack.c.l.b16 %v166
    %v468 = vunpack.c.h.b16 %v166
    %v469 = vunpack.c.l.b16 %v167
    %v470 = vunpack.c.h.b16 %v167
    %v471 = vunpack.c.l.b16 %v168
    %v472 = vunpack.c.h.b16 %v168
    %v473 = vunpack.c.l.b16 %v169
    %v474 = vunpack.c.h.b16 %v169
    %v475 = vunpack.c.l.b16 %v170
    %v476 = vunpack.c.h.b16 %v170
    %v477 = vunpack.c.l.b16 %v171
    %v478 = vunpack.c.h.b16 %v171
    %v479 = vunpack.c.l.b16 %v172
    %v480 = vunpack.c.h.b16 %v172
    %v481 = vunpack.c.l.b16 %v173
    %v482 = vunpack.c.h.b16 %v173
    %v483 = vunpack.c.l.b16 %v174
    %v484 = vunpack.c.h.b16 %v174
    %v485 = vunpack.c.l.b16 %v175
    %v486 = vunpack.c.h.b16 %v175
    %v487 = vunpack.c.l.b16 %v176
    %v488 = vunpack.c.h.b16 %v176
    %v489 = vunpack.c.l.b16 %v177
    %v490 = vunpack.c.h.b16 %v177
    %v491 = vunpack.c.l.b16 %v178
    %v492 = vunpack.c.h.b16 %v178
    %v493 = vunpack.c.l.b16 %v179
    %v494 = vunpack.c.h.b16 %v179
    %v495 = vunpack.c.l.b16 %v180
    %v496 = vunpack.c.h.b16 %v180
    %v497 = vunpack.c.l.b16 %v181
    %v498 = vunpack.c.h.b16 %v181
    %v499 = vunpack.c.l.b16 %v182
    %v500 = vunpack.c.h.b16 %v182
    %v501 = vunpack.c.l.b16 %v183
    %v502 = vunpack.c.h.b16 %v183
    %v503 = vunpack.c.l.b16 %v184
    %v504 = vunpack.c.h.b16 %v184
    %v505 = vunpack.c.l.b16 %v185
    %v506 = vunpack.c.h.b16 %v185
    %v507 = vunpack.c.l.b16 %v186
    %v508 = vunpack.c.h.b16 %v186
    %v509 = vunpack.c.l.b16 %v187
    %v510 = vunpack.c.h.b16 %v187
    %v511 = vunpack.c.l.b16 %v188
    %v512 = vunpack.c.h.b16 %v188
    %v513 = vpack.c.b16 %v319, %v317
    %v514 = vpack.c.b16 %v320, %v318
    %v515 = vpack.c.b16 %v323, %v321
    %v516 = vpack.c.b16 %v324, %v322
    %v517 = vpack.c.b16 %v327, %v325
    %v518 = vpack.c.b16 %v328, %v326
    %v519 = vpack.c.b16 %v331, %v329
    %v520 = vpack.c.b16 %v332, %v330
    %v521 = vpack.c.b16 %v335, %v333
    %v522 = vpack.c.b16 %v336, %v334
    %v523 = vpack.c.b16 %v339, %v337
    %v524 = vpack.c.b16 %v340, %v338
    %v525 = vpack.c.b16 %v343, %v341
    %v526 = vpack.c.b16 %v344, %v342
    %v527 = vpack.c.b16 %v347, %v345
    %v528 = vpack.c.b16 %v348, %v346
    %v529 = vpack.c.b16 %v351, %v349
    %v530 = vpack.c.b16 %v352, %v350
    %v531 = vpack.c.b16 %v355, %v353
    %v532 = vpack.c.b16 %v356, %v354
    %v533 = vpack.c.b16 %v359, %v357
    %v534 = vpack.c.b16 %v360, %v358
    %v535 = vpack.c.b16 %v363, %v361
    %v536 = vpack.c.b16 %v364, %v362
    %v537 = vpack.c.b16 %v367, %v365
    %v538 = vpack.c.b16 %v368, %v366
    %v539 = vpack.c.b16 %v371, %v369
    %v540 = vpack.c.b16 %v372, %v370
    %v541 = vpack.c.b16 %v375, %v373
    %v542 = vpack.c.b16 %v376, %v374
    %v543 = vpack.c.b16 %v379, %v377
    %v544 = vpack.c.b16 %v380, %v378
    %v545 = vpack.c.b16 %v383, %v381
    %v546 = vpack.c.b16 %v384, %v382
    %v547 = vpack.c.b16 %v387, %v385
    %v548 = vpack.c.b16 %v388, %v386
    %v549 = vpack.c.b16 %v391, %v389
    %v550 = vpack.c.b16 %v392, %v390
    %v551 = vpack.c.b16 %v395, %v393
    %v552 = vpack.c.b16 %v396, %v394
    %v553 = vpack.c.b16 %v399, %v397
    %v554 = vpack.c.b16 %v400, %v398
    %v555 = vpack.c.b16 %v403, %v401
    %v556 = vpack.c.b16 %v404, %v402
    %v557 = vpack.c.b16 %v407, %v405
    %v558 = vpack.c.b16 %v408, %v406
    %v559 = vpack.c.b16 %v411, %v409
    %v560 = vpack.c.b16 %v412, %v410
    %v561 = vpack.c.b16 %v415, %v413
    %v562 = vpack.c.b16 %v416, %v414
    %v563 = vpack.c.b16 %v419, %v417
    %v564 = vpack.c.b16 %v420, %v418
    %v565 = vpack.c.b16 %v423, %v421
    %v566 = vpack.c.b16 %v424, %v422
    %v567 = vpack.c.b16 %v427, %v425
    %v568 = vpack.c.b16 %v428, %v426
    %v569 = vpack.c.b16 %v431, %v429
    %v570 = vpack.c.b16 %v432, %v430
    %v571 = vpack.c.b16 %v435, %v433
    %v572 = vpack.c.b16 %v436, %v434
    %v573 = vpack.c.b16 %v439, %v437
    %v574 = vpack.c.b16 %v440, %v438
    %v575 = vpack.c.b16 %v443, %v441
    %v576 = vpack.c.b16 %v444, %v442
    %v577 = vpack.c.b16 %v447, %v445
    %v578 = vpack.c.b16 %v448, %v446
    %v579 = vpack.c.b16 %v451, %v449
    %v580 = vpack.c.b16 %v452, %v450
    %v581 = vpack.c.b16 %v455, %v453
    %v582 = vpack.c.b16 %v456, %v454
    %v583 = vpack.c.b16 %v459, %v457
    %v584 = vpack.c.b16 %v460, %v458
    %v585 = vpack.c.b16 %v463, %v461
    %v586 = vpack.c.b16 %v464, %v462
    %v587 = vpack.c.b16 %v467, %v465
    %v588 = vpack.c.b16 %v468, %v466
    %v589 = vpack.c.b16 %v471, %v469
    %v590 = vpack.c.b16 %v472, %v470
    %v591 = vpack.c.b16 %v475, %v473
    %v592 = vpack.c.b16 %v476, %v474
    %v593 = vpack.c.b16 %v479, %v477
    %v594 = vpack.c.b16 %v480, %v478
    %v595 = vpack.c.b16 %v483, %v481
    %v596 = vpack.c.b16 %v484, %v482
    %v597 = vpack.c.b16 %v487, %v485
    %v598 = vpack.c.b16 %v488, %v486
    %v599 = vpack.c.b16 %v491, %v489
    %v600 = vpack.c.b16 %v492, %v490
    %v601 = vpack.c.b16 %v495, %v493
    %v602 = vpack.c.b16 %v496, %v494
    %v603 = vpack.c.b16 %v499, %v497
    %v604 = vpack.c.b16 %v500, %v498
    %v605 = vpack.c.b16 %v503, %v501
    %v606 = vpack.c.b16 %v504, %v502
    %v607 = vpack.c.b16 %v507, %v505
    %v608 = vpack.c.b16 %v508, %v506
    %v609 = vpack.c.b16 %v511, %v509
    %v610 = vpack.c.b16 %v512, %v510
    %vm709 = vcmask 130048
    %v711 = vsel %vm709, %v212, 0
    %713 = vmatpush.bf16.msra.mxu0 %v527
    %714 = vmatpush.bf16.msra.mxu0 %v525
    %715 = vmatpush.bf16.msra.mxu0 %v523
    %716 = vmatpush.bf16.msra.mxu0 %v521
    %717 = vmatpush.bf16.msra.mxu0 %v519
    %718 = vmatpush.bf16.msra.mxu0 %v517
    %719 = vmatpush.bf16.msra.mxu0 %v515
    %720 = vmatpush.bf16.msra.mxu0 %v513
    %721 = vmatmul.bf16.gmra.mxu0 %v206
    %v722 = vpop.f32.mrf.mxu0
    %v723 = vadd.f32 %v191, %v722
    %v724 = vpop.f32.mrf.mxu0
    %725 = vdwg.mxu0
    %726 = vmatpush.bf16.msra.mxu0 %v543
    %727 = vmatpush.bf16.msra.mxu0 %v541
    %728 = vmatpush.bf16.msra.mxu0 %v539
    %729 = vmatpush.bf16.msra.mxu0 %v537
    %730 = vmatpush.bf16.msra.mxu0 %v535
    %731 = vmatpush.bf16.msra.mxu0 %v533
    %732 = vmatpush.bf16.msra.mxu0 %v531
    %733 = vmatpush.bf16.msra.mxu0 %v529
    %734 = vmatmul.bf16.gmra.mxu0 %v207
    %v735 = vpop.f32.mrf.mxu0
    %v736 = vadd.f32 %v723, %v735
    %v737 = vpop.f32.mrf.mxu0
    %738 = vdwg.mxu0
    %739 = vmatpush.bf16.msra.mxu0 %v559
    %740 = vmatpush.bf16.msra.mxu0 %v557
    %741 = vmatpush.bf16.msra.mxu0 %v555
    %742 = vmatpush.bf16.msra.mxu0 %v553
    %743 = vmatpush.bf16.msra.mxu0 %v551
    %744 = vmatpush.bf16.msra.mxu0 %v549
    %745 = vmatpush.bf16.msra.mxu0 %v547
    %746 = vmatpush.bf16.msra.mxu0 %v545
    %747 = vmatmul.bf16.gmra.mxu0 %v208
    %v748 = vpop.f32.mrf.mxu0
    %v749 = vadd.f32 %v736, %v748
    %v750 = vpop.f32.mrf.mxu0
    %751 = vdwg.mxu0
    %752 = vmatpush.bf16.msra.mxu0 %v575
    %753 = vmatpush.bf16.msra.mxu0 %v573
    %754 = vmatpush.bf16.msra.mxu0 %v571
    %755 = vmatpush.bf16.msra.mxu0 %v569
    %756 = vmatpush.bf16.msra.mxu0 %v567
    %757 = vmatpush.bf16.msra.mxu0 %v565
    %758 = vmatpush.bf16.msra.mxu0 %v563
    %759 = vmatpush.bf16.msra.mxu0 %v561
    %760 = vmatmul.bf16.gmra.mxu0 %v209
    %v761 = vpop.f32.mrf.mxu0
    %v762 = vadd.f32 %v749, %v761
    %v763 = vpop.f32.mrf.mxu0
    %764 = vdwg.mxu0
    %765 = vmatpush.bf16.msra.mxu0 %v591
    %766 = vmatpush.bf16.msra.mxu0 %v589
    %767 = vmatpush.bf16.msra.mxu0 %v587
    %768 = vmatpush.bf16.msra.mxu0 %v585
    %769 = vmatpush.bf16.msra.mxu0 %v583
    %770 = vmatpush.bf16.msra.mxu0 %v581
    %771 = vmatpush.bf16.msra.mxu0 %v579
    %772 = vmatpush.bf16.msra.mxu0 %v577
    %773 = vmatmul.bf16.gmra.mxu0 %v210
    %v774 = vpop.f32.mrf.mxu0
    %v775 = vadd.f32 %v762, %v774
    %v776 = vpop.f32.mrf.mxu0
    %777 = vdwg.mxu0
    %778 = vmatpush.bf16.msra.mxu0 %v607
    %779 = vmatpush.bf16.msra.mxu0 %v605
    %780 = vmatpush.bf16.msra.mxu0 %v603
    %781 = vmatpush.bf16.msra.mxu0 %v601
    %782 = vmatpush.bf16.msra.mxu0 %v599
    %783 = vmatpush.bf16.msra.mxu0 %v597
    %784 = vmatpush.bf16.msra.mxu0 %v595
    %785 = vmatpush.bf16.msra.mxu0 %v593
    %786 = vmatmul.bf16.gmra.mxu0 %v211
    %v787 = vpop.f32.mrf.mxu0
    %v788 = vadd.f32 %v775, %v787
    %v789 = vpop.f32.mrf.mxu0
    %790 = vdwg.mxu0
    %791 = vmatpush.bf16.msra.mxu0 0
    %792 = vmatpush.bf16.msra.mxu0 0
    %793 = vmatpush.bf16.msra.mxu0 0
    %794 = vmatpush.bf16.msra.mxu0 0
    %795 = vmatpush.bf16.msra.mxu0 0
    %796 = vmatpush.bf16.msra.mxu0 0
    %797 = vmatpush.bf16.msra.mxu0 0
    %798 = vmatpush.bf16.msra.mxu0 %v609
    %799 = vmatmul.bf16.gmra.mxu0 %v711
    %v800 = vpop.f32.mrf.mxu0
    %v801 = vadd.f32 %v788, %v800
    %v802 = vpop.f32.mrf.mxu0
    %803 = vdwg.mxu0
    %804 = vmatpush.bf16.msra.mxu0 %v528
    %805 = vmatpush.bf16.msra.mxu0 %v526
    %806 = vmatpush.bf16.msra.mxu0 %v524
    %807 = vmatpush.bf16.msra.mxu0 %v522
    %808 = vmatpush.bf16.msra.mxu0 %v520
    %809 = vmatpush.bf16.msra.mxu0 %v518
    %810 = vmatpush.bf16.msra.mxu0 %v516
    %811 = vmatpush.bf16.msra.mxu0 %v514
    %812 = vmatmul.bf16.gmra.mxu0 %v206
    %v813 = vpop.f32.mrf.mxu0
    %v814 = vadd.f32 %v192, %v813
    %v815 = vpop.f32.mrf.mxu0
    %816 = vdwg.mxu0
    %817 = vmatpush.bf16.msra.mxu0 %v544
    %818 = vmatpush.bf16.msra.mxu0 %v542
    %819 = vmatpush.bf16.msra.mxu0 %v540
    %820 = vmatpush.bf16.msra.mxu0 %v538
    %821 = vmatpush.bf16.msra.mxu0 %v536
    %822 = vmatpush.bf16.msra.mxu0 %v534
    %823 = vmatpush.bf16.msra.mxu0 %v532
    %824 = vmatpush.bf16.msra.mxu0 %v530
    %825 = vmatmul.bf16.gmra.mxu0 %v207
    %v826 = vpop.f32.mrf.mxu0
    %v827 = vadd.f32 %v814, %v826
    %v828 = vpop.f32.mrf.mxu0
    %829 = vdwg.mxu0
    %830 = vmatpush.bf16.msra.mxu0 %v560
    %831 = vmatpush.bf16.msra.mxu0 %v558
    %832 = vmatpush.bf16.msra.mxu0 %v556
    %833 = vmatpush.bf16.msra.mxu0 %v554
    %834 = vmatpush.bf16.msra.mxu0 %v552
    %835 = vmatpush.bf16.msra.mxu0 %v550
    %836 = vmatpush.bf16.msra.mxu0 %v548
    %837 = vmatpush.bf16.msra.mxu0 %v546
    %838 = vmatmul.bf16.gmra.mxu0 %v208
    %v839 = vpop.f32.mrf.mxu0
    %v840 = vadd.f32 %v827, %v839
    %v841 = vpop.f32.mrf.mxu0
    %842 = vdwg.mxu0
    %843 = vmatpush.bf16.msra.mxu0 %v576
    %844 = vmatpush.bf16.msra.mxu0 %v574
    %845 = vmatpush.bf16.msra.mxu0 %v572
    %846 = vmatpush.bf16.msra.mxu0 %v570
    %847 = vmatpush.bf16.msra.mxu0 %v568
    %848 = vmatpush.bf16.msra.mxu0 %v566
    %849 = vmatpush.bf16.msra.mxu0 %v564
    %850 = vmatpush.bf16.msra.mxu0 %v562
    %851 = vmatmul.bf16.gmra.mxu0 %v209
    %v852 = vpop.f32.mrf.mxu0
    %v853 = vadd.f32 %v840, %v852
    %v854 = vpop.f32.mrf.mxu0
    %855 = vdwg.mxu0
    %856 = vmatpush.bf16.msra.mxu0 %v592
    %857 = vmatpush.bf16.msra.mxu0 %v590
    %858 = vmatpush.bf16.msra.mxu0 %v588
    %859 = vmatpush.bf16.msra.mxu0 %v586
    %860 = vmatpush.bf16.msra.mxu0 %v584
    %861 = vmatpush.bf16.msra.mxu0 %v582
    %862 = vmatpush.bf16.msra.mxu0 %v580
    %863 = vmatpush.bf16.msra.mxu0 %v578
    %864 = vmatmul.bf16.gmra.mxu0 %v210
    %v865 = vpop.f32.mrf.mxu0
    %v866 = vadd.f32 %v853, %v865
    %v867 = vpop.f32.mrf.mxu0
    %868 = vdwg.mxu0
    %869 = vmatpush.bf16.msra.mxu0 %v608
    %870 = vmatpush.bf16.msra.mxu0 %v606
    %871 = vmatpush.bf16.msra.mxu0 %v604
    %872 = vmatpush.bf16.msra.mxu0 %v602
    %873 = vmatpush.bf16.msra.mxu0 %v600
    %874 = vmatpush.bf16.msra.mxu0 %v598
    %875 = vmatpush.bf16.msra.mxu0 %v596
    %876 = vmatpush.bf16.msra.mxu0 %v594
    %877 = vmatmul.bf16.gmra.mxu0 %v211
    %v878 = vpop.f32.mrf.mxu0
    %v879 = vadd.f32 %v866, %v878
    %v880 = vpop.f32.mrf.mxu0
    %881 = vdwg.mxu0
    %882 = vmatpush.bf16.msra.mxu0 0
    %883 = vmatpush.bf16.msra.mxu0 0
    %884 = vmatpush.bf16.msra.mxu0 0
    %885 = vmatpush.bf16.msra.mxu0 0
    %886 = vmatpush.bf16.msra.mxu0 0
    %887 = vmatpush.bf16.msra.mxu0 0
    %888 = vmatpush.bf16.msra.mxu0 0
    %889 = vmatpush.bf16.msra.mxu0 %v610
    %890 = vmatmul.bf16.gmra.mxu0 %v711
    %v891 = vpop.f32.mrf.mxu0
    %v892 = vadd.f32 %v879, %v891
    %v893 = vpop.f32.mrf.mxu0
    %894 = vdwg.mxu0
    %v895 = vmax.f32 %v801, 0.0
    %v896 = vmax.f32 %v892, 0.0
    %v897 = vpack.c.bf16 %v895, %v895
    %v898 = vpack.c.bf16 %v896, %v896
    %v899 = vld [vmem:[#allocation10] sm:$0xf]
    %v900 = vld [vmem:[#allocation10 + $0x4] sm:$0xf]
    %v901 = vld [vmem:[#allocation10 + $0x8] sm:$0xf]
    %v902 = vld [vmem:[#allocation10 + $0xc] sm:$0xf]
    %v903 = vld [vmem:[#allocation10 + $0x10] sm:$0xf]
    %v904 = vld [vmem:[#allocation10 + $0x14] sm:$0xf]
    %v905 = vld [vmem:[#allocation10 + $0x18] sm:$0xf]
    %v906 = vld [vmem:[#allocation10 + $0x1c] sm:$0xf]
    %v907 = vld [vmem:[#allocation10 + $0x20] sm:$0xf]
    %v908 = vld [vmem:[#allocation10 + $0x24] sm:$0xf]
    %v909 = vld [vmem:[#allocation10 + $0x28] sm:$0xf]
    %v910 = vld [vmem:[#allocation10 + $0x2c] sm:$0xf]
    %v911 = vld [vmem:[#allocation10 + $0x30] sm:$0xf]
    %v912 = vld [vmem:[#allocation10 + $0x34] sm:$0xf]
    %v913 = vld [vmem:[#allocation10 + $0x38] sm:$0xf]
    %v914 = vld [vmem:[#allocation10 + $0x3c] sm:$0xf]
    %v915 = vld [vmem:[#allocation10 + $0x40] sm:$0xf]
    %v916 = vld [vmem:[#allocation10 + $0x44] sm:$0xf]
    %v917 = vld [vmem:[#allocation10 + $0x48] sm:$0xf]
    %v918 = vld [vmem:[#allocation10 + $0x4c] sm:$0xf]
    %v919 = vld [vmem:[#allocation10 + $0x50] sm:$0xf]
    %v920 = vld [vmem:[#allocation10 + $0x54] sm:$0xf]
    %v921 = vld [vmem:[#allocation10 + $0x58] sm:$0xf]
    %v922 = vld [vmem:[#allocation10 + $0x5c] sm:$0xf]
    %v923 = vld [vmem:[#allocation10 + $0x60] sm:$0xf]
    %v924 = vld [vmem:[#allocation10 + $0x64] sm:$0xf]
    %v925 = vld [vmem:[#allocation10 + $0x68] sm:$0xf]
    %v926 = vld [vmem:[#allocation10 + $0x6c] sm:$0xf]
    %v927 = vld [vmem:[#allocation10 + $0x70] sm:$0xf]
    %v928 = vld [vmem:[#allocation10 + $0x74] sm:$0xf]
    %v929 = vld [vmem:[#allocation10 + $0x78] sm:$0xf]
    %v930 = vld [vmem:[#allocation10 + $0x7c] sm:$0xf]
    %v931 = vld [vmem:[%s4] sm:$0x1]
    %v933 = vperm.slane %v931, 0
    %v967 = vunpack.c.l.b16 %v899
    %v968 = vunpack.c.l.b16 %v900
    %v969 = vunpack.c.l.b16 %v901
    %v970 = vunpack.c.l.b16 %v902
    %v971 = vunpack.c.l.b16 %v903
    %v972 = vunpack.c.l.b16 %v904
    %v973 = vunpack.c.l.b16 %v905
    %v974 = vunpack.c.l.b16 %v906
    %v975 = vunpack.c.l.b16 %v907
    %v976 = vunpack.c.l.b16 %v908
    %v977 = vunpack.c.l.b16 %v909
    %v978 = vunpack.c.l.b16 %v910
    %v979 = vunpack.c.l.b16 %v911
    %v980 = vunpack.c.l.b16 %v912
    %v981 = vunpack.c.l.b16 %v913
    %v982 = vunpack.c.l.b16 %v914
    %v983 = vunpack.c.l.b16 %v915
    %v984 = vunpack.c.l.b16 %v916
    %v985 = vunpack.c.l.b16 %v917
    %v986 = vunpack.c.l.b16 %v918
    %v987 = vunpack.c.l.b16 %v919
    %v988 = vunpack.c.l.b16 %v920
    %v989 = vunpack.c.l.b16 %v921
    %v990 = vunpack.c.l.b16 %v922
    %v991 = vunpack.c.l.b16 %v923
    %v992 = vunpack.c.l.b16 %v924
    %v993 = vunpack.c.l.b16 %v925
    %v994 = vunpack.c.l.b16 %v926
    %v995 = vunpack.c.l.b16 %v927
    %v996 = vunpack.c.l.b16 %v928
    %v997 = vunpack.c.l.b16 %v929
    %v998 = vunpack.c.l.b16 %v930
    %v999 = vpack.c.b16 %v968, %v967
    %v1000 = vpack.c.b16 %v970, %v969
    %v1001 = vpack.c.b16 %v972, %v971
    %v1002 = vpack.c.b16 %v974, %v973
    %v1003 = vpack.c.b16 %v976, %v975
    %v1004 = vpack.c.b16 %v978, %v977
    %v1005 = vpack.c.b16 %v980, %v979
    %v1006 = vpack.c.b16 %v982, %v981
    %v1007 = vpack.c.b16 %v984, %v983
    %v1008 = vpack.c.b16 %v986, %v985
    %v1009 = vpack.c.b16 %v988, %v987
    %v1010 = vpack.c.b16 %v990, %v989
    %v1011 = vpack.c.b16 %v992, %v991
    %v1012 = vpack.c.b16 %v994, %v993
    %v1013 = vpack.c.b16 %v996, %v995
    %v1014 = vpack.c.b16 %v998, %v997
    %1031 = vmatpush.bf16.msra.mxu0 %v1006
    %1032 = vmatpush.bf16.msra.mxu0 %v1005
    %1033 = vmatpush.bf16.msra.mxu0 %v1004
    %1034 = vmatpush.bf16.msra.mxu0 %v1003
    %1035 = vmatpush.bf16.msra.mxu0 %v1002
    %1036 = vmatpush.bf16.msra.mxu0 %v1001
    %1037 = vmatpush.bf16.msra.mxu0 %v1000
    %1038 = vmatpush.bf16.msra.mxu0 %v999
    %1039 = vmatmul.bf16.gmra.mxu0 %v897
    %v1040 = vpop.f32.mrf.mxu0
    %v1041 = vadd.f32 %v933, %v1040
    %v1042 = vpop.f32.mrf.mxu0
    %1043 = vdwg.mxu0
    %1044 = vmatpush.bf16.msra.mxu0 %v1014
    %1045 = vmatpush.bf16.msra.mxu0 %v1013
    %1046 = vmatpush.bf16.msra.mxu0 %v1012
    %1047 = vmatpush.bf16.msra.mxu0 %v1011
    %1048 = vmatpush.bf16.msra.mxu0 %v1010
    %1049 = vmatpush.bf16.msra.mxu0 %v1009
    %1050 = vmatpush.bf16.msra.mxu0 %v1008
    %1051 = vmatpush.bf16.msra.mxu0 %v1007
    %1052 = vmatmul.bf16.gmra.mxu0 %v898
    %v1053 = vpop.f32.mrf.mxu0
    %v1054 = vadd.f32 %v1041, %v1053
    %v1055 = vpop.f32.mrf.mxu0
    %1056 = vdwg.mxu0
    %v1057 = vmax.f32 %v1054, 0.0
    %s1058 = smul.u32 0, 8
    %s1059 = scalar_lea.vmem [#allocation12], %s1058
    %1060 = vst [vmem:[%s1059] sm:$0xff] %v1057
    %v1061 = vlaneseq
    %v1062 = vshrl.u32 %v1061, 7
    %v1063 = vstv %s1058
    %v1064 = vadd.s32 %v1063, %v1062
    %vm1065 = vcmp.lt.s32.totalorder %v1064, 2
    %v1066 = vld [vmem:[#allocation2] sm:$0x1]
    %v1067 = vsel %vm1065, 1, 0
    %vm1068 = vcmp.eq.s32.totalorder %v1067, 1
    %v1069 = vsel %vm1068, %v1057, -inf
    %v1070 = vrot.slane %v1069, 4
    %v1071 = vmax.f32 %v1069, %v1070
    %v1072 = vrot.slane %v1071, 2
    %v1073 = vmax.f32 %v1071, %v1072
    %v1074 = vrot.slane %v1073, 1
    %v1075 = vmax.f32 %v1073, %v1074
    %v1076 = vmax.f32 %v1066, %v1075
    %v1078 = vperm.slane %v1076, 0
    %v1080 = vsub.f32 %v1057, %v1078
    %v1081 = vmul.f32 %v1080, 1.442695
    %v1082 = vpow.pop %v1081
    %v1083 = vsel %vm1068, %v1082, 0.0
    %v1084 = vld [vmem:[#allocation3] sm:$0x1]
    %v1085 = vsub.f32 %v1066, %v1076
    %v1086 = vmul.f32 %v1085, 1.442695
    %v1087 = vpow.pop %v1086
    %v1088 = vmul.f32 %v1084, %v1087
    %v1089 = vrot.slane %v1083, 4
    %v1090 = vadd.f32 %v1083, %v1089
    %v1091 = vrot.slane %v1090, 2
    %v1092 = vadd.f32 %v1090, %v1091
    %v1093 = vrot.slane %v1092, 1
    %v1094 = vadd.f32 %v1092, %v1093
    %v1095 = vadd.f32 %v1088, %v1094
    %1096 = vst [vmem:[#allocation3] sm:$0x1] %v1095
    %1097 = vst [vmem:[#allocation2] sm:$0x1] %v1076
    // Predicated region
    $region42: #{tpu_custom_call.1} parent=1 // pred_check
      %p1098 = pneg %p81
    $region43: #{tpu_custom_call.1} parent=1 // pred_check_branch
      %1100 = sbr.rel (%p1098) target = $region45
    $region44: #{tpu_custom_call.1} parent=1 // pred_region
      %v1101 = vld [vmem:[#allocation3] sm:$0x1]
      %v1102 = vrcp.pop %v1101
      %v1103 = vld [vmem:[#allocation12] sm:$0xff]
      %v1104 = vld [vmem:[#allocation2] sm:$0x1]
      %v1106 = vperm.slane %v1104, 0
      %v1108 = vsub.f32 %v1103, %v1106
      %v1109 = vmul.f32 %v1108, 1.442695
      %v1110 = vpow.pop %v1109
      %v1112 = vperm.slane %v1102, 0
      %v1114 = vmul.f32 %v1110, %v1112
      %1115 = vst [vmem:[#allocation12] sm:$0xff] %v1114
    $region45: #{tpu_custom_call.1} parent=1 // pred_fallthru
      _
    // Predicated region
    $region46: #{tpu_custom_call.1} parent=1 // pred_check
      _
    $region47: #{tpu_custom_call.1} parent=1 // pred_check_branch
      %1117 = sbr.rel (0) target = $region49
    $region48: #{tpu_custom_call.1} parent=1 // pred_region
      %1119 = vsyncadd [#allocation6], 0
      %s1121 = sshll.u32 [#allocation12], 4
      %s1122 = int_to_ptr.vmem [resolvable:$true] %s1121
      %s1123 = sshll.u32 %s5, 4
      %s1124 = int_to_ptr.hbm [resolvable:$true] %s1123
      %1126 = dma.vmem_to_hbm [thread:$0]  %s1122, 128, %s1124, [#allocation6]
    $region49: #{tpu_custom_call.1} parent=1 // pred_fallthru
      _
    // Predicated region
    $region50: #{tpu_custom_call.1} parent=1 // pred_check
      _
    $region51: #{tpu_custom_call.1} parent=1 // pred_check_branch
      %1128 = sbr.rel (0) target = $region53
    $region52: #{tpu_custom_call.1} parent=1 // pred_region
      %1130 = dma.done [#allocation6], 128
    $region53: #{tpu_custom_call.1} parent=1 // pred_fallthru
      _
    %1131 = vsyncpa [#allocation5], 1
    %1132 = vsyncpa [#allocation8], 1
    %1133 = vsyncpa [#allocation11], 1
    %1134 = vsyncpa [#allocation6], 1

</llo_original>
